<compile_context>
chip_gen: v7x
topology: tpu7x:2x2x1
jax: 0.10.0
libtpu: 0.0.40
codegen_flags: <defaults>
</compile_context>

<pallas_src>
import functools

import jax
import jax.numpy as jnp
from jax.experimental import pallas as pl
from jax.experimental.pallas import tpu as pltpu

STATE_DIM = 6      # Acrobot-v1 observation dim
ACTION_DIM = 3     # Acrobot-v1 action dim
H1 = 64
H2 = 128

# Packed-parameter layout (rows x 128 lanes); every boundary is 16-row aligned
# so bf16 (16,128) tile slices never straddle a tile.
PAD_IN = 16                    # layer-1 contraction dim padded 6 -> 16
LANES = 128
W1_R0, W1_R1 = 0, 16           # W1 padded to (16, 128)   [real: (6, 64)]
W2_R0, W2_R1 = 16, 144         # W2 padded to (128, 128)  [real: (64, 128)]
W3_R0, W3_R1 = 144, 272        # W3 padded to (128, 128)  [real: (128, 3)]
B_R0, B_R1 = 272, 288          # bias block (16, 128): row0=b1, row1=b2, row2=b3
PACK_ROWS = 288


def dqn_kernel(x_ref, p_ref, o_ref, xpad_ref):
    # x_ref:    (TILE_B, 6)    f32  -- streamed batch tile (raw, unpadded)
    # p_ref:    (288, 128)     bf16 -- all weights + biases, resident in VMEM
    # o_ref:    (TILE_B, 128)  bf16 -- lane-dense output tile
    # xpad_ref: (TILE_B, 16)   f32  -- scratch: x zero-padded to aligned K

    # In-kernel pad (6 -> 16): zero the scratch every step (cheap, and safe
    # under megacore grid sharding), then overwrite the 6 real feature lanes.
    xpad_ref[...] = jnp.zeros_like(xpad_ref)
    xpad_ref[:, 0:STATE_DIM] = x_ref[...]
    x = xpad_ref[...].astype(jnp.bfloat16)          # (TILE_B, 16) bf16

    w1 = p_ref[W1_R0:W1_R1, :]                       # (16, 128)  bf16
    w2 = p_ref[W2_R0:W2_R1, :]                       # (128, 128) bf16
    w3 = p_ref[W3_R0:W3_R1, :]                       # (128, 128) bf16
    bias = p_ref[B_R0:B_R1, :].astype(jnp.float32)   # (16, 128)  f32
    b1 = bias[0:1, :]
    b2 = bias[1:2, :]
    b3 = bias[2:3, :]

    # Layer 1: Linear(6 -> 64) + ReLU (padded to 128 lanes; pad lanes stay 0)
    h1 = jnp.dot(x, w1, preferred_element_type=jnp.float32)
    h1 = jnp.maximum(h1 + b1, 0.0)

    # Layer 2: Linear(64 -> 128) + ReLU
    h2 = jnp.dot(h1.astype(jnp.bfloat16), w2, preferred_element_type=jnp.float32)
    h2 = jnp.maximum(h2 + b2, 0.0)

    # Layer 3: Linear(128 -> 3), zero-padded to 128 output lanes; bf16 store
    out = jnp.dot(h2.astype(jnp.bfloat16), w3, preferred_element_type=jnp.float32)
    o_ref[...] = (out + b3).astype(o_ref.dtype)


def pack_params(params):
    """Pack PyTorch-layout params into one lane-padded bf16 buffer."""
    w1, b1, w2, b2, w3, b3 = params   # w: (out, in) f32, b: (out,) f32
    P = jnp.zeros((PACK_ROWS, LANES), jnp.float32)
    P = P.at[W1_R0:W1_R0 + STATE_DIM, 0:H1].set(w1.T)
    P = P.at[W2_R0:W2_R0 + H1, 0:H2].set(w2.T)
    P = P.at[W3_R0:W3_R0 + H2, 0:ACTION_DIM].set(w3.T)
    P = P.at[B_R0 + 0, 0:H1].set(b1)
    P = P.at[B_R0 + 1, 0:H2].set(b2)
    P = P.at[B_R0 + 2, 0:ACTION_DIM].set(b3)
    return P.astype(jnp.bfloat16)


def _round_up(x, m):
    return ((x + m - 1) // m) * m


def _choose_tiling(batch):
    """Single block for small batches; otherwise ~<=1024-row tiles with an
    even tile count so both v7x TensorCores are used."""
    if batch <= 512:
        return batch, 1                              # one block == full batch
    n_tiles = max(2, 2 * ((batch + 2047) // 2048))   # even number of tiles
    tile_b = _round_up(-(-batch // n_tiles), 16)     # 16 = bf16 sublane tile
    n_tiles = -(-batch // tile_b)
    return tile_b, n_tiles


@jax.jit
def dqn_forward(x, packed):
    B = x.shape[0]
    tile_b, n_tiles = _choose_tiling(B)

    flops = 2 * B * (PAD_IN * LANES + LANES * LANES + LANES * LANES)
    bytes_accessed = (B * STATE_DIM * 4          # x read (f32)
                      + PACK_ROWS * LANES * 2    # resident weights (bf16)
                      + B * LANES * 2)           # output written (bf16)

    out = pl.pallas_call(
        dqn_kernel,
        out_shape=jax.ShapeDtypeStruct((B, LANES), jnp.bfloat16),
        grid=(n_tiles,),
        in_specs=[
            # Raw (B, 6) input: last dim == full array dim, so legal; pad/cast
            # happens inside the kernel.
            pl.BlockSpec((tile_b, STATE_DIM), lambda i: (i, 0)),
            # Constant index_map -> weights DMA'd once, resident across steps.
            pl.BlockSpec((PACK_ROWS, LANES), lambda i: (0, 0)),
        ],
        out_specs=pl.BlockSpec((tile_b, LANES), lambda i: (i, 0)),
        scratch_shapes=[pltpu.VMEM((tile_b, PAD_IN), jnp.float32)],
        compiler_params=pltpu.CompilerParams(
            dimension_semantics=("parallel",)),
        cost_estimate=pl.CostEstimate(
            flops=flops, transcendentals=0, bytes_accessed=bytes_accessed),
    )(x.astype(jnp.float32), packed)

    return out[:, :ACTION_DIM].astype(jnp.float32)


def init_params(key):
    """PyTorch nn.Linear default init: uniform(-1/sqrt(fan_in), 1/sqrt(fan_in))."""
    dims = [(STATE_DIM, H1), (H1, H2), (H2, ACTION_DIM)]
    params = []
    for fan_in, fan_out in dims:
        key, kw, kb = jax.random.split(key, 3)
        bound = 1.0 / (fan_in ** 0.5)
        w = jax.random.uniform(kw, (fan_out, fan_in), jnp.float32, -bound, bound)
        b = jax.random.uniform(kb, (fan_out,), jnp.float32, -bound, bound)
        params += [w, b]
    return params


def reference_forward_f32(x, params):
    w1, b1, w2, b2, w3, b3 = params
    h = jnp.maximum(x @ w1.T + b1, 0.0)
    h = jnp.maximum(h @ w2.T + b2, 0.0)
    return h @ w3.T + b3


def reference_forward_bf16(x, params):
    """Mirrors kernel numerics: bf16 params/MXU inputs, f32 accum, bf16 store."""
    w1, b1, w2, b2, w3, b3 = params
    bf = jnp.bfloat16
    rnd = lambda v: v.astype(bf).astype(jnp.float32)
    h = jnp.dot(x.astype(bf), w1.T.astype(bf),
                preferred_element_type=jnp.float32) + rnd(b1)
    h = jnp.maximum(h, 0.0)
    h = jnp.dot(h.astype(bf), w2.T.astype(bf),
                preferred_element_type=jnp.float32) + rnd(b2)
    h = jnp.maximum(h, 0.0)
    out = jnp.dot(h.astype(bf), w3.T.astype(bf),
                  preferred_element_type=jnp.float32) + rnd(b3)
    return out.astype(bf).astype(jnp.float32)


if __name__ == "__main__":
    key = jax.random.PRNGKey(0)
    kx, kp = jax.random.split(key)

    params = init_params(kp)
    packed = pack_params(params)

    # B=2: tiny single block; B=256: single block; B=1100: 2 tiles, ragged tail.
    for B in (2, 256, 1100):
        x = jax.random.normal(jax.random.fold_in(kx, B), (B, STATE_DIM),
                              jnp.float32)

        out = jax.block_until_ready(dqn_forward(x, packed))
        assert out.shape == (B, ACTION_DIM)

        ref_bf = reference_forward_bf16(x, params)   # kernel-equivalent numerics
        ref_f32 = reference_forward_f32(x, params)   # original f32 module math
        assert jnp.allclose(out, ref_bf, atol=1e-2, rtol=1e-2), (
            f"mismatch vs bf16 reference at B={B}: "
            f"{jnp.max(jnp.abs(out - ref_bf))}")
        assert jnp.allclose(out, ref_f32, atol=7e-2, rtol=7e-2), (
            f"mismatch vs f32 reference at B={B}: "
            f"{jnp.max(jnp.abs(out - ref_f32))}")

    print("KERNEL_OK")
</pallas_src>

<mosaic_0001>
module attributes {stable_mosaic.version = 11 : i64} {
  func.func @dqn_kernel(%arg0: i32, %arg1: memref<2x6xf32, #tpu.memory_space<vmem>>, %arg2: memref<288x128xbf16, #tpu.memory_space<vmem>>, %arg3: memref<2x128xbf16, #tpu.memory_space<vmem>>, %arg4: memref<2x16xf32, #tpu.memory_space<vmem>>) attributes {dimension_semantics = [#tpu.dimension_semantics<parallel>], iteration_bounds = array<i64: 1>, scalar_prefetch = 0 : i64, scratch_operands = 1 : i64, tpu.core_type = #tpu.core_type<tc>, window_params = [{transform_indices = @transform_0, window_bounds = array<i64: 2, 6>}, {pipeline_mode = #tpu.pipeline_mode<synchronous>, transform_indices = @transform_1, window_bounds = array<i64: 288, 128>}, {transform_indices = @transform_2, window_bounds = array<i64: 2, 128>}]} {
    %cst = arith.constant 0.000000e+00 : f32
    %0 = vector.broadcast %cst : f32 to vector<2x16xf32>
    %c0 = arith.constant 0 : index
    %c0_0 = arith.constant 0 : index
    %1 = vector.load %arg4[%c0, %c0_0] : memref<2x16xf32, #tpu.memory_space<vmem>>, vector<2x16xf32>
    tpu.vector_store %arg4[%c0, %c0_0], %0 {strides = array<i32>} : memref<2x16xf32, #tpu.memory_space<vmem>>, vector<2x16xf32>,
    %c0_1 = arith.constant 0 : index
    %c0_2 = arith.constant 0 : index
    %2 = vector.load %arg1[%c0_1, %c0_2] : memref<2x6xf32, #tpu.memory_space<vmem>>, vector<2x6xf32>
    %c0_3 = arith.constant 0 : index
    %c0_4 = arith.constant 0 : index
    %3 = vector.load %arg4[%c0_3, %c0_4] : memref<2x16xf32, #tpu.memory_space<vmem>>, vector<2x6xf32>
    tpu.vector_store %arg4[%c0_3, %c0_4], %2 {strides = array<i32>} : memref<2x16xf32, #tpu.memory_space<vmem>>, vector<2x6xf32>,
    %c0_5 = arith.constant 0 : index
    %c0_6 = arith.constant 0 : index
    %4 = vector.load %arg4[%c0_5, %c0_6] : memref<2x16xf32, #tpu.memory_space<vmem>>, vector<2x16xf32>
    %5 = arith.truncf %4 : vector<2x16xf32> to vector<2x16xbf16>
    %c0_7 = arith.constant 0 : index
    %c0_8 = arith.constant 0 : index
    %6 = vector.load %arg2[%c0_7, %c0_8] : memref<288x128xbf16, #tpu.memory_space<vmem>>, vector<16x128xbf16>
    %c16 = arith.constant 16 : index
    %c0_9 = arith.constant 0 : index
    %7 = vector.load %arg2[%c16, %c0_9] : memref<288x128xbf16, #tpu.memory_space<vmem>>, vector<128x128xbf16>
    %c144 = arith.constant 144 : index
    %c0_10 = arith.constant 0 : index
    %8 = vector.load %arg2[%c144, %c0_10] : memref<288x128xbf16, #tpu.memory_space<vmem>>, vector<128x128xbf16>
    %c272 = arith.constant 272 : index
    %c0_11 = arith.constant 0 : index
    %9 = vector.load %arg2[%c272, %c0_11] : memref<288x128xbf16, #tpu.memory_space<vmem>>, vector<16x128xbf16>
    %10 = arith.extf %9 : vector<16x128xbf16> to vector<16x128xf32>
    %11 = vector.extract_strided_slice %10 {offsets = [0, 0], sizes = [1, 128], strides = [1, 1]} : vector<16x128xf32> to vector<1x128xf32>
    %12 = vector.extract_strided_slice %10 {offsets = [1, 0], sizes = [1, 128], strides = [1, 1]} : vector<16x128xf32> to vector<1x128xf32>
    %13 = vector.extract_strided_slice %10 {offsets = [2, 0], sizes = [1, 128], strides = [1, 1]} : vector<16x128xf32> to vector<1x128xf32>
    %cst_12 = arith.constant dense<0.000000e+00> : vector<2x128xf32>
    %14 = tpu.matmul %5, %6, %cst_12 {dimension_numbers = #tpu.dot_dimension_numbers<[1], [0], [0], [1], [0, 0, 1, 1], [], []>} : vector<2x16xbf16>, vector<16x128xbf16>, vector<2x128xf32> -> vector<2x128xf32>
    %15 = vector.broadcast %11 : vector<1x128xf32> to vector<2x128xf32>
    %16 = arith.addf %14, %15 : vector<2x128xf32>
    %cst_13 = arith.constant 0.000000e+00 : f32
    %17 = vector.broadcast %cst_13 : f32 to vector<2x128xf32>
    %18 = arith.maximumf %16, %17 : vector<2x128xf32>
    %19 = arith.truncf %18 : vector<2x128xf32> to vector<2x128xbf16>
    %cst_14 = arith.constant dense<0.000000e+00> : vector<2x128xf32>
    %20 = tpu.matmul %19, %7, %cst_14 {dimension_numbers = #tpu.dot_dimension_numbers<[1], [0], [0], [1], [0, 0, 1, 1], [], []>} : vector<2x128xbf16>, vector<128x128xbf16>, vector<2x128xf32> -> vector<2x128xf32>
    %21 = vector.broadcast %12 : vector<1x128xf32> to vector<2x128xf32>
    %22 = arith.addf %20, %21 : vector<2x128xf32>
    %cst_15 = arith.constant 0.000000e+00 : f32
    %23 = vector.broadcast %cst_15 : f32 to vector<2x128xf32>
    %24 = arith.maximumf %22, %23 : vector<2x128xf32>
    %25 = arith.truncf %24 : vector<2x128xf32> to vector<2x128xbf16>
    %cst_16 = arith.constant dense<0.000000e+00> : vector<2x128xf32>
    %26 = tpu.matmul %25, %8, %cst_16 {dimension_numbers = #tpu.dot_dimension_numbers<[1], [0], [0], [1], [0, 0, 1, 1], [], []>} : vector<2x128xbf16>, vector<128x128xbf16>, vector<2x128xf32> -> vector<2x128xf32>
    %27 = vector.broadcast %13 : vector<1x128xf32> to vector<2x128xf32>
    %28 = arith.addf %26, %27 : vector<2x128xf32>
    %29 = arith.truncf %28 : vector<2x128xf32> to vector<2x128xbf16>
    %c0_17 = arith.constant 0 : index
    %c0_18 = arith.constant 0 : index
    %30 = vector.load %arg3[%c0_17, %c0_18] : memref<2x128xbf16, #tpu.memory_space<vmem>>, vector<2x128xbf16>
    tpu.vector_store %arg3[%c0_17, %c0_18], %29 {strides = array<i32>} : memref<2x128xbf16, #tpu.memory_space<vmem>>, vector<2x128xbf16>,
    return
  }
  func.func @transform_0(%arg0: i32) -> (i32, i32) {
    %c0_i32 = arith.constant 0 : i32
    %c0_i32_0 = arith.constant 0 : i32
    return %arg0, %c0_i32 : i32, i32
  }
  func.func @transform_1(%arg0: i32) -> (i32, i32) {
    %c0_i32 = arith.constant 0 : i32
    %c0_i32_0 = arith.constant 0 : i32
    %c0_i32_1 = arith.constant 0 : i32
    return %c0_i32, %c0_i32_0 : i32, i32
  }
  func.func @transform_2(%arg0: i32) -> (i32, i32) {
    %c0_i32 = arith.constant 0 : i32
    %c0_i32_0 = arith.constant 0 : i32
    return %arg0, %c0_i32 : i32, i32
  }
}

</mosaic_0001>

<llo_original>
// kernel: dqn_forward.1
$region0: #{dqn_forward.1}
  #allocation0 [shape = 'u32[]', space=smem, size = 0x4, offset = 0x4, fixed_abs, tag = 'smem constant byte address 0x4 - core index']
  #allocation1 [shape = 'u32[144,128]{1,0:T(1,128)}', space=vmem, size = 0x12000, scoped, tag = 'internal scratch']
  #allocation2 [shape = 'f32[2,16]{1,0:T(2,128)}', space=vmem, size = 0x400, scoped, tag = 'scratch operand']
  %s0 = inlined_call_operand.hbm [shape: f32[2,6], index: 0, kind: input, shape index: {}]
  %s1 = inlined_call_operand.hbm [shape: bf16[288,128], index: 1, kind: input, shape index: {}]
  %s2 = inlined_call_operand.vmem [shape: bf16[2,128], index: 2, kind: output, shape index: {}]
  %s3 = sld [smem:[#allocation0]]
  $region26: #{dqn_forward.1} parent=0
    _
  %s5 = ssub.s32 1, %s3
  %s6 = scalar_select 0, %s5, %s3
  $region1: #{dqn_forward.1} parent=0
    #allocation3 [shape = 'u8[1024]{0}', space=vmem, size = 0x400, scoped, tag = 'input window, operand 0, single buffered']
    #allocation4 [shape = 's32[1]{0}', space=sflag, size = 0x4, scoped, tag = 'scoped memory for dqn_forward.1']
    #allocation5 [shape = 'u8[73728]{0}', space=vmem, size = 0x12000, scoped, tag = 'input window, operand 1, single buffered']
    #allocation6 [shape = 's32[1]{0}', space=sflag, size = 0x4, scoped, tag = 'scoped memory for dqn_forward.1']
    %7 = vsyncpa [#allocation4], 0
    %8 = vsyncpa [#allocation6], 0
    // Predicated region
    $region2: #{dqn_forward.1} parent=1 // pred_check
      _
    $region3: #{dqn_forward.1} parent=1 // pred_check_branch
      %10 = sbr.rel (0) target = $region5
    $region4: #{dqn_forward.1} parent=1 // pred_region
      %s12 = ssub.s32 32, 32
      %13 = vsyncadd [#allocation4], %s12
      %s15 = sshll.u32 [#allocation3], 4
      %s16 = int_to_ptr.vmem [resolvable:$true] %s15
      %18 = dma.hbm_to_vmem [thread:$0]  %s0, 32, %s16, [#allocation4]
    $region5: #{dqn_forward.1} parent=1 // pred_fallthru
      _
    // Predicated region
    $region6: #{dqn_forward.1} parent=1 // pred_check
      _
    $region7: #{dqn_forward.1} parent=1 // pred_check_branch
      %20 = sbr.rel (0) target = $region9
    $region8: #{dqn_forward.1} parent=1 // pred_region
      %s22 = ssub.s32 2304, 2304
      %23 = vsyncadd [#allocation6], %s22
      %s24 = sshll.u32 [#allocation5], 4
      %s25 = int_to_ptr.vmem [resolvable:$true] %s24
      %30 = dma.hbm_to_vmem [thread:$0]  %s1, 2304, %s25, [#allocation6], 64, 64, 4
    $region9: #{dqn_forward.1} parent=1 // pred_fallthru
      _
    // Predicated region
    $region10: #{dqn_forward.1} parent=1 // pred_check
      _
    $region11: #{dqn_forward.1} parent=1 // pred_check_branch
      %32 = sbr.rel (0) target = $region13
    $region12: #{dqn_forward.1} parent=1 // pred_region
      %33 = dma.done [#allocation4], 32
    $region13: #{dqn_forward.1} parent=1 // pred_fallthru
      _
    // Predicated region
    $region14: #{dqn_forward.1} parent=1 // pred_check
      _
    $region15: #{dqn_forward.1} parent=1 // pred_check_branch
      %35 = sbr.rel (0) target = $region17
    $region16: #{dqn_forward.1} parent=1 // pred_region
      %36 = dma.done [#allocation6], 2304
    $region17: #{dqn_forward.1} parent=1 // pred_fallthru
      _
    %vm38 = vcmask 123904
    %39 = vst.msk [vmem:[#allocation2] sm:$0x3] %vm38, 0.0
    %v40 = vld [vmem:[#allocation3] sm:$0x3]
    %vm41 = vcmask 41984
    %42 = vst.msk [vmem:[#allocation2] sm:$0x3] %vm41, %v40
    %v43 = vld [vmem:[#allocation2] sm:$0x3]
    %v44 = vpack.c.bf16 %v43, %v43
    %v45 = vld [vmem:[#allocation5] sm:$0xf]
    %v46 = vld [vmem:[#allocation5 + $0x4] sm:$0xf]
    %v47 = vld [vmem:[#allocation5 + $0x8] sm:$0xf]
    %v48 = vld [vmem:[#allocation5 + $0xc] sm:$0xf]
    %v49 = vld [vmem:[#allocation5 + $0x10] sm:$0xf]
    %v50 = vld [vmem:[#allocation5 + $0x14] sm:$0xf]
    %v51 = vld [vmem:[#allocation5 + $0x18] sm:$0xf]
    %v52 = vld [vmem:[#allocation5 + $0x1c] sm:$0xf]
    %v53 = vld [vmem:[#allocation5 + $0x20] sm:$0xf]
    %v54 = vld [vmem:[#allocation5 + $0x24] sm:$0xf]
    %v55 = vld [vmem:[#allocation5 + $0x28] sm:$0xf]
    %v56 = vld [vmem:[#allocation5 + $0x2c] sm:$0xf]
    %v57 = vld [vmem:[#allocation5 + $0x30] sm:$0xf]
    %v58 = vld [vmem:[#allocation5 + $0x34] sm:$0xf]
    %v59 = vld [vmem:[#allocation5 + $0x38] sm:$0xf]
    %v60 = vld [vmem:[#allocation5 + $0x3c] sm:$0xf]
    %v61 = vld [vmem:[#allocation5 + $0x40] sm:$0xf]
    %v62 = vld [vmem:[#allocation5 + $0x44] sm:$0xf]
    %v63 = vld [vmem:[#allocation5 + $0x48] sm:$0xf]
    %v64 = vld [vmem:[#allocation5 + $0x4c] sm:$0xf]
    %v65 = vld [vmem:[#allocation5 + $0x50] sm:$0xf]
    %v66 = vld [vmem:[#allocation5 + $0x54] sm:$0xf]
    %v67 = vld [vmem:[#allocation5 + $0x58] sm:$0xf]
    %v68 = vld [vmem:[#allocation5 + $0x5c] sm:$0xf]
    %v69 = vld [vmem:[#allocation5 + $0x60] sm:$0xf]
    %v70 = vld [vmem:[#allocation5 + $0x64] sm:$0xf]
    %v71 = vld [vmem:[#allocation5 + $0x68] sm:$0xf]
    %v72 = vld [vmem:[#allocation5 + $0x6c] sm:$0xf]
    %v73 = vld [vmem:[#allocation5 + $0x70] sm:$0xf]
    %v74 = vld [vmem:[#allocation5 + $0x74] sm:$0xf]
    %v75 = vld [vmem:[#allocation5 + $0x78] sm:$0xf]
    %v76 = vld [vmem:[#allocation5 + $0x7c] sm:$0xf]
    %v77 = vld [vmem:[#allocation5 + $0x80] sm:$0xf]
    %v78 = vld [vmem:[#allocation5 + $0x84] sm:$0xf]
    %v79 = vld [vmem:[#allocation5 + $0x88] sm:$0xf]
    %v80 = vunpack.c.l.bf16 %v79
    %v81 = vlaneseq
    %v82 = vshrl.u32 %v81, 7
    %v83 = vsub.s32 0, %v82
    %v84 = vrot.slane %v80, %v83
    %v87 = vunpack.c.l.b16 %v45
    %v88 = vunpack.c.l.b16 %v46
    %v89 = vpack.c.b16 %v88, %v87
    %vm91 = vcmask 130048
    %v93 = vsel %vm91, %v44, 0
    %95 = vmatprep.subr.bf16.mxu0 0
    %96 = vmatpush1.bf16.msra.mxu0 %v89
    %97 = vmatprep.subr.bf16.mxu0 0
    %98 = vmatpush1.bf16.msra.mxu0 0
    %99 = vmatprep.subr.bf16.mxu0 0
    %100 = vmatpush1.bf16.msra.mxu0 0
    %101 = vmatprep.subr.bf16.mxu0 0
    %102 = vmatpush1.bf16.msra.mxu0 0
    %103 = vmatprep.subr.bf16.mxu0 0
    %104 = vmatpush1.bf16.msra.mxu0 0
    %105 = vmatprep.subr.bf16.mxu0 0
    %106 = vmatpush1.bf16.msra.mxu0 0
    %107 = vmatprep.subr.bf16.mxu0 0
    %108 = vmatpush1.bf16.msra.mxu0 0
    %109 = vmatprep.subr.bf16.mxu0 0
    %110 = vmatpush1.bf16.msra.mxu0 0
    %111 = vmatprep.subr.bf16.mxu0 0
    %112 = vmatpush1.bf16.msra.mxu0 0
    %113 = vmatprep.subr.bf16.mxu0 0
    %114 = vmatpush1.bf16.msra.mxu0 0
    %115 = vmatprep.subr.bf16.mxu0 0
    %116 = vmatpush1.bf16.msra.mxu0 0
    %117 = vmatprep.subr.bf16.mxu0 0
    %118 = vmatpush1.bf16.msra.mxu0 0
    %119 = vmatprep.subr.bf16.mxu0 0
    %120 = vmatpush1.bf16.msra.mxu0 0
    %121 = vmatprep.subr.bf16.mxu0 0
    %122 = vmatpush1.bf16.msra.mxu0 0
    %123 = vmatprep.subr.bf16.mxu0 0
    %124 = vmatpush1.bf16.msra.mxu0 0
    %125 = vmatprep.subr.bf16.mxu0 0
    %126 = vmatpush1.bf16.msra.mxu0 0
    %127 = vmatprep.mubr.bf16.mxu0 0
    %128 = vmatmul.mubr.bf16.gmra.mrb[0].mxu0 %v93
    %v129 = vpop.f32.mrb[0].mxu0
    %v130 = vadd.f32 %v84, %v129
    %v131 = vpop.f32.mrb[0].mxu0
    %v132 = vpop.f32.mrb[0].mxu0
    %v133 = vpop.f32.mrb[0].mxu0
    %134 = vdwg.mxu0
    %v135 = vmax.f32 %v130, 0.0
    %v136 = vpack.c.bf16 %v135, %v135
    %v137 = vlaneseq
    %v138 = vshrl.u32 %v137, 7
    %v139 = vsub.s32 1, %v138
    %v140 = vrot.slane %v80, %v139
    %v157 = vunpack.c.l.b16 %v47
    %v158 = vunpack.c.l.b16 %v48
    %v159 = vunpack.c.l.b16 %v49
    %v160 = vunpack.c.l.b16 %v50
    %v161 = vunpack.c.l.b16 %v51
    %v162 = vunpack.c.l.b16 %v52
    %v163 = vunpack.c.l.b16 %v53
    %v164 = vunpack.c.l.b16 %v54
    %v165 = vunpack.c.l.b16 %v55
    %v166 = vunpack.c.l.b16 %v56
    %v167 = vunpack.c.l.b16 %v57
    %v168 = vunpack.c.l.b16 %v58
    %v169 = vunpack.c.l.b16 %v59
    %v170 = vunpack.c.l.b16 %v60
    %v171 = vunpack.c.l.b16 %v61
    %v172 = vunpack.c.l.b16 %v62
    %v173 = vpack.c.b16 %v158, %v157
    %v174 = vpack.c.b16 %v160, %v159
    %v175 = vpack.c.b16 %v162, %v161
    %v176 = vpack.c.b16 %v164, %v163
    %v177 = vpack.c.b16 %v166, %v165
    %v178 = vpack.c.b16 %v168, %v167
    %v179 = vpack.c.b16 %v170, %v169
    %v180 = vpack.c.b16 %v172, %v171
    %189 = vmatprep.subr.bf16.mxu0 0
    %190 = vmatpush1.bf16.msra.mxu0 %v173
    %191 = vmatprep.subr.bf16.mxu0 0
    %192 = vmatpush1.bf16.msra.mxu0 %v174
    %193 = vmatprep.subr.bf16.mxu0 0
    %194 = vmatpush1.bf16.msra.mxu0 %v175
    %195 = vmatprep.subr.bf16.mxu0 0
    %196 = vmatpush1.bf16.msra.mxu0 %v176
    %197 = vmatprep.subr.bf16.mxu0 0
    %198 = vmatpush1.bf16.msra.mxu0 %v177
    %199 = vmatprep.subr.bf16.mxu0 0
    %200 = vmatpush1.bf16.msra.mxu0 %v178
    %201 = vmatprep.subr.bf16.mxu0 0
    %202 = vmatpush1.bf16.msra.mxu0 %v179
    %203 = vmatprep.subr.bf16.mxu0 0
    %204 = vmatpush1.bf16.msra.mxu0 %v180
    %205 = vmatprep.subr.bf16.mxu0 0
    %206 = vmatpush1.bf16.msra.mxu0 0
    %207 = vmatprep.subr.bf16.mxu0 0
    %208 = vmatpush1.bf16.msra.mxu0 0
    %209 = vmatprep.subr.bf16.mxu0 0
    %210 = vmatpush1.bf16.msra.mxu0 0
    %211 = vmatprep.subr.bf16.mxu0 0
    %212 = vmatpush1.bf16.msra.mxu0 0
    %213 = vmatprep.subr.bf16.mxu0 0
    %214 = vmatpush1.bf16.msra.mxu0 0
    %215 = vmatprep.subr.bf16.mxu0 0
    %216 = vmatpush1.bf16.msra.mxu0 0
    %217 = vmatprep.subr.bf16.mxu0 0
    %218 = vmatpush1.bf16.msra.mxu0 0
    %219 = vmatprep.subr.bf16.mxu0 0
    %220 = vmatpush1.bf16.msra.mxu0 0
    %221 = vmatprep.mubr.bf16.mxu0 0
    %222 = vmatmul.mubr.bf16.gmra.mrb[0].mxu0 %v136
    %v223 = vpop.f32.mrb[0].mxu0
    %v224 = vadd.f32 %v140, %v223
    %v225 = vpop.f32.mrb[0].mxu0
    %v226 = vpop.f32.mrb[0].mxu0
    %v227 = vpop.f32.mrb[0].mxu0
    %228 = vdwg.mxu0
    %v229 = vmax.f32 %v224, 0.0
    %v230 = vpack.c.bf16 %v229, %v229
    %v231 = vlaneseq
    %v232 = vshrl.u32 %v231, 7
    %v233 = vsub.s32 2, %v232
    %v234 = vrot.slane %v80, %v233
    %v251 = vunpack.c.l.b16 %v63
    %v252 = vunpack.c.l.b16 %v64
    %v253 = vunpack.c.l.b16 %v65
    %v254 = vunpack.c.l.b16 %v66
    %v255 = vunpack.c.l.b16 %v67
    %v256 = vunpack.c.l.b16 %v68
    %v257 = vunpack.c.l.b16 %v69
    %v258 = vunpack.c.l.b16 %v70
    %v259 = vunpack.c.l.b16 %v71
    %v260 = vunpack.c.l.b16 %v72
    %v261 = vunpack.c.l.b16 %v73
    %v262 = vunpack.c.l.b16 %v74
    %v263 = vunpack.c.l.b16 %v75
    %v264 = vunpack.c.l.b16 %v76
    %v265 = vunpack.c.l.b16 %v77
    %v266 = vunpack.c.l.b16 %v78
    %v267 = vpack.c.b16 %v252, %v251
    %v268 = vpack.c.b16 %v254, %v253
    %v269 = vpack.c.b16 %v256, %v255
    %v270 = vpack.c.b16 %v258, %v257
    %v271 = vpack.c.b16 %v260, %v259
    %v272 = vpack.c.b16 %v262, %v261
    %v273 = vpack.c.b16 %v264, %v263
    %v274 = vpack.c.b16 %v266, %v265
    %283 = vmatprep.subr.bf16.mxu0 0
    %284 = vmatpush1.bf16.msra.mxu0 %v267
    %285 = vmatprep.subr.bf16.mxu0 0
    %286 = vmatpush1.bf16.msra.mxu0 %v268
    %287 = vmatprep.subr.bf16.mxu0 0
    %288 = vmatpush1.bf16.msra.mxu0 %v269
    %289 = vmatprep.subr.bf16.mxu0 0
    %290 = vmatpush1.bf16.msra.mxu0 %v270
    %291 = vmatprep.subr.bf16.mxu0 0
    %292 = vmatpush1.bf16.msra.mxu0 %v271
    %293 = vmatprep.subr.bf16.mxu0 0
    %294 = vmatpush1.bf16.msra.mxu0 %v272
    %295 = vmatprep.subr.bf16.mxu0 0
    %296 = vmatpush1.bf16.msra.mxu0 %v273
    %297 = vmatprep.subr.bf16.mxu0 0
    %298 = vmatpush1.bf16.msra.mxu0 %v274
    %299 = vmatprep.subr.bf16.mxu0 0
    %300 = vmatpush1.bf16.msra.mxu0 0
    %301 = vmatprep.subr.bf16.mxu0 0
    %302 = vmatpush1.bf16.msra.mxu0 0
    %303 = vmatprep.subr.bf16.mxu0 0
    %304 = vmatpush1.bf16.msra.mxu0 0
    %305 = vmatprep.subr.bf16.mxu0 0
    %306 = vmatpush1.bf16.msra.mxu0 0
    %307 = vmatprep.subr.bf16.mxu0 0
    %308 = vmatpush1.bf16.msra.mxu0 0
    %309 = vmatprep.subr.bf16.mxu0 0
    %310 = vmatpush1.bf16.msra.mxu0 0
    %311 = vmatprep.subr.bf16.mxu0 0
    %312 = vmatpush1.bf16.msra.mxu0 0
    %313 = vmatprep.subr.bf16.mxu0 0
    %314 = vmatpush1.bf16.msra.mxu0 0
    %315 = vmatprep.mubr.bf16.mxu0 0
    %316 = vmatmul.mubr.bf16.gmra.mrb[0].mxu0 %v230
    %v317 = vpop.f32.mrb[0].mxu0
    %v318 = vadd.f32 %v234, %v317
    %v319 = vpop.f32.mrb[0].mxu0
    %v320 = vpop.f32.mrb[0].mxu0
    %v321 = vpop.f32.mrb[0].mxu0
    %322 = vdwg.mxu0
    %v323 = vpack.c.bf16 %v318, %v318
    %324 = vst [vmem:[%s2] sm:$0x1] %v323
    // Predicated region
    $region18: #{dqn_forward.1} parent=1 // pred_check
      _
    $region19: #{dqn_forward.1} parent=1 // pred_check_branch
      %326 = sbr.rel (0) target = $region21
    $region20: #{dqn_forward.1} parent=1 // pred_region
      _
    $region21: #{dqn_forward.1} parent=1 // pred_fallthru
      _
    // Predicated region
    $region22: #{dqn_forward.1} parent=1 // pred_check
      _
    $region23: #{dqn_forward.1} parent=1 // pred_check_branch
      %328 = sbr.rel (0) target = $region25
    $region24: #{dqn_forward.1} parent=1 // pred_region
      _
    $region25: #{dqn_forward.1} parent=1 // pred_fallthru
      _
    %329 = vsyncpa [#allocation4], 1
    %330 = vsyncpa [#allocation6], 1

</llo_original>
